<compile_context>
chip_gen: v7x
topology: tpu7x:2x2x1
jax: 0.10.0
libtpu: 0.0.40
codegen_flags: <defaults>
</compile_context>

<pallas_src>
import jax
import jax.numpy as jnp
from jax.experimental import pallas as pl
from jax.experimental.pallas import tpu as pltpu


_VMEM_BUDGET = 28 * 1024 * 1024   # double-buffered tile footprint cap (v7x-safe)
_VMEM_LIMIT = 48 * 1024 * 1024    # scoped VMEM limit handed to Mosaic


def _round_up(x, m):
    return ((x + m - 1) // m) * m


def _cdiv(a, b):
    return -(-a // b)


def _pick_tile(dim, max_tile, step=128):
    """Largest multiple of `step` that divides `dim` (a multiple of step) and is <= max_tile."""
    best = step
    t = step
    lim = min(dim, max_tile)
    while t <= lim:
        if dim % t == 0:
            best = t
        t += step
    return best


def _softplus(x):
    # Stable softplus: max(x, 0) + log1p(exp(-|x|)) == log1p(exp(x))
    return jnp.maximum(x, 0.0) + jnp.log1p(jnp.exp(-jnp.abs(x)))


def _sample(mu, rho, eps, mask):
    # mu * mask + softplus(rho) * eps, with mask in {0, 1} applied as a select.
    return jnp.where(mask > 0.5, mu, 0.0) + _softplus(rho) * eps


# ----------------------------------------------------------------------------------
# Kernels
# ----------------------------------------------------------------------------------

def _fused_kernel(x_ref, mu_w_ref, rho_w_ref, eps_w_ref, mask_w_ref,
                  mu_b_ref, rho_b_ref, eps_b_ref, mask_b_ref,
                  o_ref, w_ref, b_ref):
    """Single-batch-tile path: sample the (tn, tk) weight tile and fold it into x @ w.T."""
    k = pl.program_id(1)
    n_k = pl.num_programs(1)

    # Sample this weight tile once and stage it in its output buffer.
    w_ref[...] = _sample(mu_w_ref[...], rho_w_ref[...], eps_w_ref[...], mask_w_ref[...])

    @pl.when(k == 0)
    def _():
        o_ref[...] = jnp.zeros_like(o_ref)

    # x @ w.T : contract dim 1 of both operands; accumulate directly into the resident
    # f32 output block (no separate accumulator scratch).
    o_ref[...] += jax.lax.dot_general(
        x_ref[...], w_ref[...],
        dimension_numbers=(((1,), (1,)), ((), ())),
        preferred_element_type=jnp.float32)

    @pl.when(k == n_k - 1)
    def _():
        b = _sample(mu_b_ref[...], rho_b_ref[...], eps_b_ref[...], mask_b_ref[...])
        b_ref[...] = b
        o_ref[...] += b


def _sample_kernel(mu_w_ref, rho_w_ref, eps_w_ref, mask_w_ref,
                   mu_b_ref, rho_b_ref, eps_b_ref, mask_b_ref,
                   w_ref, b_ref):
    """Large-batch path, kernel A: draw w / b exactly once."""
    w_ref[...] = _sample(mu_w_ref[...], rho_w_ref[...], eps_w_ref[...], mask_w_ref[...])

    @pl.when(pl.program_id(1) == 0)
    def _():
        b_ref[...] = _sample(mu_b_ref[...], rho_b_ref[...], eps_b_ref[...], mask_b_ref[...])


def _matmul_bias_kernel(x_ref, w_ref, b_ref, o_ref):
    """Large-batch path, kernel B: out = x @ w.T + b, accumulating in the resident o block."""
    k = pl.program_id(2)

    @pl.when(k == 0)
    def _():
        o_ref[...] = jnp.zeros_like(o_ref)

    o_ref[...] += jax.lax.dot_general(
        x_ref[...], w_ref[...],
        dimension_numbers=(((1,), (1,)), ((), ())),
        preferred_element_type=jnp.float32)

    @pl.when(k == pl.num_programs(2) - 1)
    def _():
        o_ref[...] += b_ref[...]


# ----------------------------------------------------------------------------------
# Wrapper
# ----------------------------------------------------------------------------------

def linear_bayesian_gaussian(x, mu_w, rho_w, mu_b, rho_b, *, p, seed, max_tm=512):
    """Bayesian drop-connect linear forward.

    x:     (B, in_features) f32
    mu_w:  (out_features, in_features), rho_w: same
    mu_b:  (out_features,),             rho_b: same
    Returns (out, w_sampled, b_sampled)  -- matching F.linear(x, w_sampled, b_sampled).
    """
    f32 = jnp.float32
    B, in_f = x.shape
    out_f, in_f2 = mu_w.shape
    assert in_f2 == in_f

    # ---- Host-side draws (TODO(synk): move on-chip when pltpu PRNG is interpretable). ----
    key = jax.random.PRNGKey(seed)
    k_ew, k_mw, k_eb, k_mb = jax.random.split(key, 4)
    eps_w = jax.random.normal(k_ew, (out_f, in_f), f32)
    mask_w = jax.random.bernoulli(k_mw, p, (out_f, in_f)).astype(f32)   # 1 with prob p (keep)
    eps_b = jax.random.normal(k_eb, (out_f,), f32)
    mask_b = jax.random.bernoulli(k_mb, p, (out_f,)).astype(f32)

    # ---- Lane-dense 128-aligned padding. Padded eps/mask are zero, so padded sampled
    #      weights are exactly zero (no softplus(0) leakage into out-of-range regions). ----
    in_p = _round_up(in_f, 128)
    out_p = _round_up(out_f, 128)

    def padw(a):
        return jnp.pad(a.astype(f32), ((0, out_p - out_f), (0, in_p - in_f)))

    def padb(a):
        return jnp.pad(a.astype(f32).reshape(1, out_f), ((0, 0), (0, out_p - out_f)))

    mu_w_p, rho_w_p = padw(mu_w), padw(rho_w)
    eps_w_p, mask_w_p = padw(eps_w), padw(mask_w)
    mu_b_p, rho_b_p = padb(mu_b), padb(rho_b)
    eps_b_p, mask_b_p = padb(eps_b), padb(mask_b)

    # ---- Tile selection: one batch tile whenever it fits (n_i == 1 -> fused path). ----
    b_rows8 = _round_up(B, 8)
    fused = b_rows8 <= max_tm
    tm = b_rows8 if fused else max_tm
    n_i = 1 if fused else _cdiv(B, tm)
    b_rows = tm * n_i
    x_p = jnp.pad(x.astype(f32), ((0, b_rows - B), (0, in_p - in_f)))

    tn = _pick_tile(out_p, 512)
    tk = _pick_tile(in_p, 2048)

    def fused_vmem(tn_, tk_):
        # x + 4 weight-shaped inputs + w out (all double-buffered) + resident out block.
        # This is an upper bound on the footprint of every kernel below.
        return 4 * (2 * tm * tk_ + 10 * tn_ * tk_ + 2 * tm * tn_)

    while fused_vmem(tn, tk) > _VMEM_BUDGET and tk > 128:
        tk = _pick_tile(in_p, tk - 128)
    while fused_vmem(tn, tk) > _VMEM_BUDGET and tn > 128:
        tn = _pick_tile(out_p, tn - 128)

    n_j = out_p // tn
    n_k = in_p // tk

    compiler_params_2d = pltpu.CompilerParams(
        dimension_semantics=("parallel", "arbitrary"),
        vmem_limit_bytes=_VMEM_LIMIT)

    if fused:
        out_pad, w_pad, b_pad = pl.pallas_call(
            _fused_kernel,
            out_shape=(
                jax.ShapeDtypeStruct((b_rows, out_p), f32),   # out
                jax.ShapeDtypeStruct((out_p, in_p), f32),     # sampled weight
                jax.ShapeDtypeStruct((1, out_p), f32),         # sampled bias
            ),
            grid_spec=pltpu.PrefetchScalarGridSpec(
                num_scalar_prefetch=0,
                grid=(n_j, n_k),                              # out-feature axis first (v7x sharding)
                in_specs=[
                    pl.BlockSpec((tm, tk), lambda j, k: (0, k)),   # x
                    pl.BlockSpec((tn, tk), lambda j, k: (j, k)),   # mu_w
                    pl.BlockSpec((tn, tk), lambda j, k: (j, k)),   # rho_w
                    pl.BlockSpec((tn, tk), lambda j, k: (j, k)),   # eps_w
                    pl.BlockSpec((tn, tk), lambda j, k: (j, k)),   # mask_w
                    pl.BlockSpec((1, tn), lambda j, k: (0, j)),    # mu_b
                    pl.BlockSpec((1, tn), lambda j, k: (0, j)),    # rho_b
                    pl.BlockSpec((1, tn), lambda j, k: (0, j)),    # eps_b
                    pl.BlockSpec((1, tn), lambda j, k: (0, j)),    # mask_b
                ],
                out_specs=[
                    pl.BlockSpec((tm, tn), lambda j, k: (0, j)),   # out (resident over k)
                    pl.BlockSpec((tn, tk), lambda j, k: (j, k)),   # w_sampled
                    pl.BlockSpec((1, tn), lambda j, k: (0, j)),    # b_sampled
                ],
            ),
            compiler_params=compiler_params_2d,
            cost_estimate=pl.CostEstimate(
                flops=2 * b_rows * out_p * in_p,
                transcendentals=2 * (out_p * in_p + out_p),
                bytes_accessed=4 * (b_rows * in_p + 5 * out_p * in_p
                                    + b_rows * out_p + 5 * out_p)),
        )(x_p, mu_w_p, rho_w_p, eps_w_p, mask_w_p, mu_b_p, rho_b_p, eps_b_p, mask_b_p)
    else:
        # Kernel A: sample w / b exactly once.
        w_pad, b_pad = pl.pallas_call(
            _sample_kernel,
            out_shape=(
                jax.ShapeDtypeStruct((out_p, in_p), f32),
                jax.ShapeDtypeStruct((1, out_p), f32),
            ),
            grid_spec=pltpu.PrefetchScalarGridSpec(
                num_scalar_prefetch=0,
                grid=(n_j, n_k),
                in_specs=[
                    pl.BlockSpec((tn, tk), lambda j, k: (j, k)),   # mu_w
                    pl.BlockSpec((tn, tk), lambda j, k: (j, k)),   # rho_w
                    pl.BlockSpec((tn, tk), lambda j, k: (j, k)),   # eps_w
                    pl.BlockSpec((tn, tk), lambda j, k: (j, k)),   # mask_w
                    pl.BlockSpec((1, tn), lambda j, k: (0, j)),    # mu_b
                    pl.BlockSpec((1, tn), lambda j, k: (0, j)),    # rho_b
                    pl.BlockSpec((1, tn), lambda j, k: (0, j)),    # eps_b
                    pl.BlockSpec((1, tn), lambda j, k: (0, j)),    # mask_b
                ],
                out_specs=[
                    pl.BlockSpec((tn, tk), lambda j, k: (j, k)),   # w_sampled
                    pl.BlockSpec((1, tn), lambda j, k: (0, j)),    # b_sampled
                ],
            ),
            compiler_params=compiler_params_2d,
            cost_estimate=pl.CostEstimate(
                flops=3 * out_p * in_p,
                transcendentals=2 * (out_p * in_p + out_p),
                bytes_accessed=4 * 5 * (out_p * in_p + out_p)),
        )(mu_w_p, rho_w_p, eps_w_p, mask_w_p, mu_b_p, rho_b_p, eps_b_p, mask_b_p)

        # Kernel B: plain tiled matmul + bias on the sampled weights.
        out_pad = pl.pallas_call(
            _matmul_bias_kernel,
            out_shape=jax.ShapeDtypeStruct((b_rows, out_p), f32),
            grid_spec=pltpu.PrefetchScalarGridSpec(
                num_scalar_prefetch=0,
                grid=(n_j, n_i, n_k),
                in_specs=[
                    pl.BlockSpec((tm, tk), lambda j, i, k: (i, k)),   # x
                    pl.BlockSpec((tn, tk), lambda j, i, k: (j, k)),   # w_sampled
                    pl.BlockSpec((1, tn), lambda j, i, k: (0, j)),    # b_sampled
                ],
                out_specs=pl.BlockSpec((tm, tn), lambda j, i, k: (i, j)),
            ),
            compiler_params=pltpu.CompilerParams(
                dimension_semantics=("parallel", "parallel", "arbitrary"),
                vmem_limit_bytes=_VMEM_LIMIT),
            cost_estimate=pl.CostEstimate(
                flops=2 * b_rows * out_p * in_p,
                transcendentals=0,
                bytes_accessed=4 * (b_rows * in_p + out_p * in_p + out_p + b_rows * out_p)),
        )(x_p, w_pad, b_pad)

    out = out_pad[:B, :out_f]
    w_sampled = w_pad[:out_f, :in_f]
    b_sampled = b_pad[0, :out_f]
    return out, w_sampled, b_sampled


if __name__ == "__main__":
    # Small shapes implied by the module (a plain Bayesian linear layer).
    batch, in_features, out_features = 8, 32, 16
    p = 0.5  # Bernoulli drop-connect (keep) probability

    key = jax.random.PRNGKey(0)
    k_x, k_mw, k_mb, k_rw, k_rb = jax.random.split(key, 5)

    bound = float(jnp.sqrt(1.0 / in_features))
    # muParameter init: U(-sqrt(1/in), +sqrt(1/in)); rhoParameter init: U(-3, -2)
    mu_w = jax.random.uniform(k_mw, (out_features, in_features), jnp.float32, -bound, bound)
    mu_b = jax.random.uniform(k_mb, (out_features,), jnp.float32, -bound, bound)
    rho_w = jax.random.uniform(k_rw, (out_features, in_features), jnp.float32, -3.0, -2.0)
    rho_b = jax.random.uniform(k_rb, (out_features,), jnp.float32, -3.0, -2.0)
    x = jax.random.normal(k_x, (batch, in_features), jnp.float32)

    out, w_s, b_s = linear_bayesian_gaussian(x, mu_w, rho_w, mu_b, rho_b, p=p, seed=1234)
    out = jax.block_until_ready(out)

    assert out.shape == (batch, out_features)
    assert w_s.shape == (out_features, in_features)
    assert b_s.shape == (out_features,)
    assert bool(jnp.all(jnp.isfinite(out)))
    assert bool(jnp.all(jnp.isfinite(w_s))) and bool(jnp.all(jnp.isfinite(b_s)))

    # out must equal F.linear(x, w_sampled, b_sampled) for the weights the kernel produced.
    ref = jnp.dot(x, w_s.T, preferred_element_type=jnp.float32) + b_s
    err = float(jnp.max(jnp.abs(out - ref)))
    assert jnp.allclose(out, ref, atol=5e-4, rtol=5e-4), err

    # The sampled weights match the module's formula mu*mask + log1p(exp(rho))*eps
    # for the same host-side draws.
    key_s = jax.random.PRNGKey(1234)
    k_ew, k_mw2, k_eb, k_mb2 = jax.random.split(key_s, 4)
    eps_w_ref = jax.random.normal(k_ew, (out_features, in_features), jnp.float32)
    mask_w_ref = jax.random.bernoulli(k_mw2, p, (out_features, in_features)).astype(jnp.float32)
    w_formula = mu_w * mask_w_ref + jnp.log1p(jnp.exp(rho_w)) * eps_w_ref
    assert jnp.allclose(w_s, w_formula, atol=1e-5, rtol=1e-5)

    # Sampling really happened; deterministic per seed; fresh sample for a different seed.
    assert not bool(jnp.allclose(w_s, mu_w, atol=1e-6))
    out2, w_s2, _ = linear_bayesian_gaussian(x, mu_w, rho_w, mu_b, rho_b, p=p, seed=1234)
    assert bool(jnp.allclose(out, out2)) and bool(jnp.allclose(w_s, w_s2))
    _, w_s3, _ = linear_bayesian_gaussian(x, mu_w, rho_w, mu_b, rho_b, p=p, seed=4321)
    assert not bool(jnp.allclose(w_s, w_s3))

    # Exercise the split (multi-batch-tile) path at a small size by capping the batch tile.
    x_big = jax.random.normal(k_x, (96, in_features), jnp.float32)
    out_b, w_sb, b_sb = linear_bayesian_gaussian(
        x_big, mu_w, rho_w, mu_b, rho_b, p=p, seed=7, max_tm=32)
    out_b = jax.block_until_ready(out_b)
    ref_b = jnp.dot(x_big, w_sb.T, preferred_element_type=jnp.float32) + b_sb
    assert jnp.allclose(out_b, ref_b, atol=5e-4, rtol=5e-4)

    print("KERNEL_OK")
</pallas_src>

<mosaic_0001>
module attributes {stable_mosaic.version = 11 : i64} {
  func.func @_fused_kernel(%arg0: i32, %arg1: i32, %arg2: memref<8x128xf32, #tpu.memory_space<vmem>>, %arg3: memref<128x128xf32, #tpu.memory_space<vmem>>, %arg4: memref<128x128xf32, #tpu.memory_space<vmem>>, %arg5: memref<128x128xf32, #tpu.memory_space<vmem>>, %arg6: memref<128x128xf32, #tpu.memory_space<vmem>>, %arg7: memref<1x128xf32, #tpu.memory_space<vmem>>, %arg8: memref<1x128xf32, #tpu.memory_space<vmem>>, %arg9: memref<1x128xf32, #tpu.memory_space<vmem>>, %arg10: memref<1x128xf32, #tpu.memory_space<vmem>>, %arg11: memref<8x128xf32, #tpu.memory_space<vmem>>, %arg12: memref<128x128xf32, #tpu.memory_space<vmem>>, %arg13: memref<1x128xf32, #tpu.memory_space<vmem>>) attributes {dimension_semantics = [#tpu.dimension_semantics<parallel>, #tpu.dimension_semantics<arbitrary>], iteration_bounds = array<i64: 1, 1>, scalar_prefetch = 0 : i64, scratch_operands = 0 : i64, tpu.core_type = #tpu.core_type<tc>, window_params = [{transform_indices = @transform_0, window_bounds = array<i64: 8, 128>}, {transform_indices = @transform_1, window_bounds = array<i64: 128, 128>}, {transform_indices = @transform_2, window_bounds = array<i64: 128, 128>}, {transform_indices = @transform_3, window_bounds = array<i64: 128, 128>}, {transform_indices = @transform_4, window_bounds = array<i64: 128, 128>}, {transform_indices = @transform_5, window_bounds = array<i64: 1, 128>}, {transform_indices = @transform_6, window_bounds = array<i64: 1, 128>}, {transform_indices = @transform_7, window_bounds = array<i64: 1, 128>}, {transform_indices = @transform_8, window_bounds = array<i64: 1, 128>}, {transform_indices = @transform_9, window_bounds = array<i64: 8, 128>}, {transform_indices = @transform_10, window_bounds = array<i64: 128, 128>}, {transform_indices = @transform_11, window_bounds = array<i64: 1, 128>}]} {
    %c0 = arith.constant 0 : index
    %c0_0 = arith.constant 0 : index
    %0 = vector.load %arg3[%c0, %c0_0] : memref<128x128xf32, #tpu.memory_space<vmem>>, vector<128x128xf32>
    %c0_1 = arith.constant 0 : index
    %c0_2 = arith.constant 0 : index
    %1 = vector.load %arg4[%c0_1, %c0_2] : memref<128x128xf32, #tpu.memory_space<vmem>>, vector<128x128xf32>
    %c0_3 = arith.constant 0 : index
    %c0_4 = arith.constant 0 : index
    %2 = vector.load %arg5[%c0_3, %c0_4] : memref<128x128xf32, #tpu.memory_space<vmem>>, vector<128x128xf32>
    %c0_5 = arith.constant 0 : index
    %c0_6 = arith.constant 0 : index
    %3 = vector.load %arg6[%c0_5, %c0_6] : memref<128x128xf32, #tpu.memory_space<vmem>>, vector<128x128xf32>
    %cst = arith.constant 5.000000e-01 : f32
    %4 = vector.broadcast %cst : f32 to vector<128x128xf32>
    %5 = arith.cmpf ogt, %3, %4 : vector<128x128xf32>
    %cst_7 = arith.constant 0.000000e+00 : f32
    %6 = vector.broadcast %cst_7 : f32 to vector<128x128xf32>
    %7 = arith.select %5, %0, %6 : vector<128x128xi1>, vector<128x128xf32>
    %cst_8 = arith.constant 0.000000e+00 : f32
    %8 = vector.broadcast %cst_8 : f32 to vector<128x128xf32>
    %9 = arith.maximumf %1, %8 : vector<128x128xf32>
    %10 = math.absf %1 : vector<128x128xf32>
    %cst_9 = arith.constant 0.000000e+00 : f32
    %11 = vector.broadcast %cst_9 : f32 to vector<128x128xf32>
    %12 = arith.subf %11, %10 : vector<128x128xf32>
    %13 = math.exp %12 : vector<128x128xf32>
    %14 = math.log1p %13 : vector<128x128xf32>
    %15 = arith.addf %9, %14 : vector<128x128xf32>
    %16 = arith.mulf %15, %2 : vector<128x128xf32>
    %17 = arith.addf %7, %16 : vector<128x128xf32>
    %c0_10 = arith.constant 0 : index
    %c0_11 = arith.constant 0 : index
    %18 = vector.load %arg12[%c0_10, %c0_11] : memref<128x128xf32, #tpu.memory_space<vmem>>, vector<128x128xf32>
    tpu.vector_store %arg12[%c0_10, %c0_11], %17 {strides = array<i32>} : memref<128x128xf32, #tpu.memory_space<vmem>>, vector<128x128xf32>,
    %c0_i32 = arith.constant 0 : i32
    %19 = arith.cmpi eq, %arg1, %c0_i32 : i32
    %20 = arith.extui %19 : i1 to i32
    %c0_i32_12 = arith.constant 0 : i32
    %21 = arith.cmpi ne, %20, %c0_i32_12 : i32
    scf.if %21 {
      %cst_24 = arith.constant 0.000000e+00 : f32
      %31 = vector.broadcast %cst_24 : f32 to vector<8x128xf32>
      %c0_25 = arith.constant 0 : index
      %c0_26 = arith.constant 0 : index
      %32 = vector.load %arg11[%c0_25, %c0_26] : memref<8x128xf32, #tpu.memory_space<vmem>>, vector<8x128xf32>
      tpu.vector_store %arg11[%c0_25, %c0_26], %31 {strides = array<i32>} : memref<8x128xf32, #tpu.memory_space<vmem>>, vector<8x128xf32>,
    } else {
    }
    %c0_13 = arith.constant 0 : index
    %c0_14 = arith.constant 0 : index
    %22 = vector.load %arg11[%c0_13, %c0_14] : memref<8x128xf32, #tpu.memory_space<vmem>>, vector<8x128xf32>
    %c0_15 = arith.constant 0 : index
    %c0_16 = arith.constant 0 : index
    %23 = vector.load %arg2[%c0_15, %c0_16] : memref<8x128xf32, #tpu.memory_space<vmem>>, vector<8x128xf32>
    %c0_17 = arith.constant 0 : index
    %c0_18 = arith.constant 0 : index
    %24 = vector.load %arg12[%c0_17, %c0_18] : memref<128x128xf32, #tpu.memory_space<vmem>>, vector<128x128xf32>
    %cst_19 = arith.constant dense<0.000000e+00> : vector<8x128xf32>
    %25 = tpu.matmul %23, %24, %cst_19 {dimension_numbers = #tpu.dot_dimension_numbers<[1], [1], [0], [0], [0, 0, 1, 0], [], []>} : vector<8x128xf32>, vector<128x128xf32>, vector<8x128xf32> -> vector<8x128xf32>
    %26 = arith.addf %22, %25 : vector<8x128xf32>
    %c0_20 = arith.constant 0 : index
    %c0_21 = arith.constant 0 : index
    %27 = vector.load %arg11[%c0_20, %c0_21] : memref<8x128xf32, #tpu.memory_space<vmem>>, vector<8x128xf32>
    tpu.vector_store %arg11[%c0_20, %c0_21], %26 {strides = array<i32>} : memref<8x128xf32, #tpu.memory_space<vmem>>, vector<8x128xf32>,
    %c0_i32_22 = arith.constant 0 : i32
    %28 = arith.cmpi eq, %arg1, %c0_i32_22 : i32
    %29 = arith.extui %28 : i1 to i32
    %c0_i32_23 = arith.constant 0 : i32
    %30 = arith.cmpi ne, %29, %c0_i32_23 : i32
    scf.if %30 {
      %c0_24 = arith.constant 0 : index
      %c0_25 = arith.constant 0 : index
      %31 = vector.load %arg7[%c0_24, %c0_25] : memref<1x128xf32, #tpu.memory_space<vmem>>, vector<1x128xf32>
      %c0_26 = arith.constant 0 : index
      %c0_27 = arith.constant 0 : index
      %32 = vector.load %arg8[%c0_26, %c0_27] : memref<1x128xf32, #tpu.memory_space<vmem>>, vector<1x128xf32>
      %c0_28 = arith.constant 0 : index
      %c0_29 = arith.constant 0 : index
      %33 = vector.load %arg9[%c0_28, %c0_29] : memref<1x128xf32, #tpu.memory_space<vmem>>, vector<1x128xf32>
      %c0_30 = arith.constant 0 : index
      %c0_31 = arith.constant 0 : index
      %34 = vector.load %arg10[%c0_30, %c0_31] : memref<1x128xf32, #tpu.memory_space<vmem>>, vector<1x128xf32>
      %cst_32 = arith.constant 5.000000e-01 : f32
      %35 = vector.broadcast %cst_32 : f32 to vector<1x128xf32>
      %36 = arith.cmpf ogt, %34, %35 : vector<1x128xf32>
      %cst_33 = arith.constant 0.000000e+00 : f32
      %37 = vector.broadcast %cst_33 : f32 to vector<1x128xf32>
      %38 = arith.select %36, %31, %37 : vector<1x128xi1>, vector<1x128xf32>
      %cst_34 = arith.constant 0.000000e+00 : f32
      %39 = vector.broadcast %cst_34 : f32 to vector<1x128xf32>
      %40 = arith.maximumf %32, %39 : vector<1x128xf32>
      %41 = math.absf %32 : vector<1x128xf32>
      %cst_35 = arith.constant 0.000000e+00 : f32
      %42 = vector.broadcast %cst_35 : f32 to vector<1x128xf32>
      %43 = arith.subf %42, %41 : vector<1x128xf32>
      %44 = math.exp %43 : vector<1x128xf32>
      %45 = math.log1p %44 : vector<1x128xf32>
      %46 = arith.addf %40, %45 : vector<1x128xf32>
      %47 = arith.mulf %46, %33 : vector<1x128xf32>
      %48 = arith.addf %38, %47 : vector<1x128xf32>
      %c0_36 = arith.constant 0 : index
      %c0_37 = arith.constant 0 : index
      %49 = vector.load %arg13[%c0_36, %c0_37] : memref<1x128xf32, #tpu.memory_space<vmem>>, vector<1x128xf32>
      tpu.vector_store %arg13[%c0_36, %c0_37], %48 {strides = array<i32>} : memref<1x128xf32, #tpu.memory_space<vmem>>, vector<1x128xf32>,
      %c0_38 = arith.constant 0 : index
      %c0_39 = arith.constant 0 : index
      %50 = vector.load %arg11[%c0_38, %c0_39] : memref<8x128xf32, #tpu.memory_space<vmem>>, vector<8x128xf32>
      %51 = vector.broadcast %48 : vector<1x128xf32> to vector<8x128xf32>
      %52 = arith.addf %50, %51 : vector<8x128xf32>
      %c0_40 = arith.constant 0 : index
      %c0_41 = arith.constant 0 : index
      %53 = vector.load %arg11[%c0_40, %c0_41] : memref<8x128xf32, #tpu.memory_space<vmem>>, vector<8x128xf32>
      tpu.vector_store %arg11[%c0_40, %c0_41], %52 {strides = array<i32>} : memref<8x128xf32, #tpu.memory_space<vmem>>, vector<8x128xf32>,
    } else {
    }
    return
  }
  func.func @transform_0(%arg0: i32, %arg1: i32) -> (i32, i32) {
    %c0_i32 = arith.constant 0 : i32
    %c0_i32_0 = arith.constant 0 : i32
    return %c0_i32, %arg1 : i32, i32
  }
  func.func @transform_1(%arg0: i32, %arg1: i32) -> (i32, i32) {
    %c0_i32 = arith.constant 0 : i32
    return %arg0, %arg1 : i32, i32
  }
  func.func @transform_2(%arg0: i32, %arg1: i32) -> (i32, i32) {
    %c0_i32 = arith.constant 0 : i32
    return %arg0, %arg1 : i32, i32
  }
  func.func @transform_3(%arg0: i32, %arg1: i32) -> (i32, i32) {
    %c0_i32 = arith.constant 0 : i32
    return %arg0, %arg1 : i32, i32
  }
  func.func @transform_4(%arg0: i32, %arg1: i32) -> (i32, i32) {
    %c0_i32 = arith.constant 0 : i32
    return %arg0, %arg1 : i32, i32
  }
  func.func @transform_5(%arg0: i32, %arg1: i32) -> (i32, i32) {
    %c0_i32 = arith.constant 0 : i32
    %c0_i32_0 = arith.constant 0 : i32
    return %c0_i32, %arg0 : i32, i32
  }
  func.func @transform_6(%arg0: i32, %arg1: i32) -> (i32, i32) {
    %c0_i32 = arith.constant 0 : i32
    %c0_i32_0 = arith.constant 0 : i32
    return %c0_i32, %arg0 : i32, i32
  }
  func.func @transform_7(%arg0: i32, %arg1: i32) -> (i32, i32) {
    %c0_i32 = arith.constant 0 : i32
    %c0_i32_0 = arith.constant 0 : i32
    return %c0_i32, %arg0 : i32, i32
  }
  func.func @transform_8(%arg0: i32, %arg1: i32) -> (i32, i32) {
    %c0_i32 = arith.constant 0 : i32
    %c0_i32_0 = arith.constant 0 : i32
    return %c0_i32, %arg0 : i32, i32
  }
  func.func @transform_9(%arg0: i32, %arg1: i32) -> (i32, i32) {
    %c0_i32 = arith.constant 0 : i32
    %c0_i32_0 = arith.constant 0 : i32
    return %c0_i32, %arg0 : i32, i32
  }
  func.func @transform_10(%arg0: i32, %arg1: i32) -> (i32, i32) {
    %c0_i32 = arith.constant 0 : i32
    return %arg0, %arg1 : i32, i32
  }
  func.func @transform_11(%arg0: i32, %arg1: i32) -> (i32, i32) {
    %c0_i32 = arith.constant 0 : i32
    %c0_i32_0 = arith.constant 0 : i32
    return %c0_i32, %arg0 : i32, i32
  }
}

</mosaic_0001>

<llo_original>
// kernel: tpu_custom_call.1
$region0: #{tpu_custom_call.1}
  #allocation0 [shape = 'u32[]', space=smem, size = 0x4, offset = 0x4, fixed_abs, tag = 'smem constant byte address 0x4 - core index']
  #allocation1 [shape = 'u32[144,128]{1,0:T(1,128)}', space=vmem, size = 0x12000, scoped, tag = 'internal scratch']
  %s0 = inlined_call_operand.hbm [shape: f32[8,128], index: 0, kind: input, shape index: {}]
  %s1 = inlined_call_operand.hbm [shape: f32[128,128], index: 1, kind: input, shape index: {}]
  %s2 = inlined_call_operand.hbm [shape: f32[128,128], index: 2, kind: input, shape index: {}]
  %s3 = inlined_call_operand.hbm [shape: f32[128,128], index: 3, kind: input, shape index: {}]
  %s4 = inlined_call_operand.hbm [shape: f32[128,128], index: 4, kind: input, shape index: {}]
  %s5 = inlined_call_operand.vmem [shape: f32[1,128], index: 5, kind: input, shape index: {}]
  %s6 = inlined_call_operand.vmem [shape: f32[1,128], index: 6, kind: input, shape index: {}]
  %s7 = inlined_call_operand.vmem [shape: f32[1,128], index: 7, kind: input, shape index: {}]
  %s8 = inlined_call_operand.vmem [shape: f32[1,128], index: 8, kind: input, shape index: {}]
  %s9 = inlined_call_operand.hbm [shape: f32[8,128], index: 9, kind: output, shape index: {0}]
  %s10 = inlined_call_operand.hbm [shape: f32[128,128], index: 10, kind: output, shape index: {1}]
  %s11 = inlined_call_operand.hbm [shape: f32[1,128], index: 11, kind: output, shape index: {2}]
  %12 = xla_tuple %s9, %s10, %s11
  %s13 = sld [smem:[#allocation0]]
  $region90: #{tpu_custom_call.1} parent=0
    _
  %s15 = ssub.s32 1, %s13
  %s16 = scalar_select 0, %s15, %s13
  $region1: #{tpu_custom_call.1} parent=0
    #allocation2 [shape = 'u8[4096]{0}', space=vmem, size = 0x1000, scoped, tag = 'input window, operand 0, single buffered']
    #allocation3 [shape = 's32[1]{0}', space=sflag, size = 0x4, scoped, tag = 'scoped memory for tpu_custom_call.1']
    #allocation4 [shape = 's32[1]{0}', space=sflag, size = 0x4, scoped, tag = 'scoped memory for tpu_custom_call.1']
    #allocation5 [shape = 'u8[65536]{0}', space=vmem, size = 0x10000, scoped, tag = 'input window, operand 1, single buffered']
    #allocation6 [shape = 's32[1]{0}', space=sflag, size = 0x4, scoped, tag = 'scoped memory for tpu_custom_call.1']
    #allocation7 [shape = 'u8[65536]{0}', space=vmem, size = 0x10000, scoped, tag = 'input window, operand 2, single buffered']
    #allocation8 [shape = 'u8[65536]{0}', space=vmem, size = 0x10000, scoped, tag = 'input window, operand 3, single buffered']
    #allocation9 [shape = 's32[1]{0}', space=sflag, size = 0x4, scoped, tag = 'scoped memory for tpu_custom_call.1']
    #allocation10 [shape = 'u8[65536]{0}', space=vmem, size = 0x10000, scoped, tag = 'input window, operand 4, single buffered']
    #allocation11 [shape = 'u8[4096]{0}', space=vmem, size = 0x1000, scoped, tag = 'output window, operand 0, single buffered']
    #allocation12 [shape = 'u8[65536]{0}', space=vmem, size = 0x10000, scoped, tag = 'output window, operand 1, single buffered']
    #allocation13 [shape = 's32[1]{0}', space=sflag, size = 0x4, scoped, tag = 'scoped memory for tpu_custom_call.1']
    #allocation14 [shape = 'u8[512]{0}', space=vmem, size = 0x400, scoped, tag = 'output window, operand 2, single buffered']
    %17 = vsyncpa [#allocation3], 0
    %18 = vsyncpa [#allocation6], 0
    %19 = vsyncpa [#allocation9], 0
    %20 = vsyncpa [#allocation4], 0
    %21 = vsyncpa [#allocation13], 0
    // Predicated region
    $region2: #{tpu_custom_call.1} parent=1 // pred_check
      _
    $region3: #{tpu_custom_call.1} parent=1 // pred_check_branch
      %23 = sbr.rel (0) target = $region5
    $region4: #{tpu_custom_call.1} parent=1 // pred_region
      %s25 = ssub.s32 128, 128
      %26 = vsyncadd [#allocation3], %s25
      %s28 = sshll.u32 [#allocation2], 4
      %s29 = int_to_ptr.vmem [resolvable:$true] %s28
      %31 = dma.hbm_to_vmem [thread:$0]  %s0, 128, %s29, [#allocation3]
    $region5: #{tpu_custom_call.1} parent=1 // pred_fallthru
      _
    // Predicated region
    $region6: #{tpu_custom_call.1} parent=1 // pred_check
      _
    $region7: #{tpu_custom_call.1} parent=1 // pred_check_branch
      %33 = sbr.rel (0) target = $region9
    $region8: #{tpu_custom_call.1} parent=1 // pred_region
      %s35 = ssub.s32 2048, 2048
      %36 = vsyncadd [#allocation6], %s35
      %s37 = sshll.u32 [#allocation5], 4
      %s38 = int_to_ptr.vmem [resolvable:$true] %s37
      %43 = dma.hbm_to_vmem [thread:$0]  %s1, 2048, %s38, [#allocation6], 128, 128, 8
    $region9: #{tpu_custom_call.1} parent=1 // pred_fallthru
      _
    // Predicated region
    $region10: #{tpu_custom_call.1} parent=1 // pred_check
      _
    $region11: #{tpu_custom_call.1} parent=1 // pred_check_branch
      %45 = sbr.rel (0) target = $region13
    $region12: #{tpu_custom_call.1} parent=1 // pred_region
      %s47 = ssub.s32 2048, 2048
      %48 = vsyncadd [#allocation6], %s47
      %s49 = sshll.u32 [#allocation7], 4
      %s50 = int_to_ptr.vmem [resolvable:$true] %s49
      %55 = dma.hbm_to_vmem [thread:$0]  %s2, 2048, %s50, [#allocation6], 128, 128, 8
    $region13: #{tpu_custom_call.1} parent=1 // pred_fallthru
      _
    // Predicated region
    $region14: #{tpu_custom_call.1} parent=1 // pred_check
      _
    $region15: #{tpu_custom_call.1} parent=1 // pred_check_branch
      %57 = sbr.rel (0) target = $region17
    $region16: #{tpu_custom_call.1} parent=1 // pred_region
      %s59 = ssub.s32 2048, 2048
      %60 = vsyncadd [#allocation9], %s59
      %s61 = sshll.u32 [#allocation8], 4
      %s62 = int_to_ptr.vmem [resolvable:$true] %s61
      %67 = dma.hbm_to_vmem [thread:$0]  %s3, 2048, %s62, [#allocation9], 128, 128, 8
    $region17: #{tpu_custom_call.1} parent=1 // pred_fallthru
      _
    // Predicated region
    $region18: #{tpu_custom_call.1} parent=1 // pred_check
      _
    $region19: #{tpu_custom_call.1} parent=1 // pred_check_branch
      %69 = sbr.rel (0) target = $region21
    $region20: #{tpu_custom_call.1} parent=1 // pred_region
      %s71 = ssub.s32 2048, 2048
      %72 = vsyncadd [#allocation9], %s71
      %s73 = sshll.u32 [#allocation10], 4
      %s74 = int_to_ptr.vmem [resolvable:$true] %s73
      %79 = dma.hbm_to_vmem [thread:$0]  %s4, 2048, %s74, [#allocation9], 128, 128, 8
    $region21: #{tpu_custom_call.1} parent=1 // pred_fallthru
      _
    // Predicated region
    $region22: #{tpu_custom_call.1} parent=1 // pred_check
      _
    $region23: #{tpu_custom_call.1} parent=1 // pred_check_branch
      %81 = sbr.rel (0) target = $region25
    $region24: #{tpu_custom_call.1} parent=1 // pred_region
      _
    $region25: #{tpu_custom_call.1} parent=1 // pred_fallthru
      _
    // Predicated region
    $region26: #{tpu_custom_call.1} parent=1 // pred_check
      _
    $region27: #{tpu_custom_call.1} parent=1 // pred_check_branch
      %83 = sbr.rel (0) target = $region29
    $region28: #{tpu_custom_call.1} parent=1 // pred_region
      _
    $region29: #{tpu_custom_call.1} parent=1 // pred_fallthru
      _
    // Predicated region
    $region30: #{tpu_custom_call.1} parent=1 // pred_check
      _
    $region31: #{tpu_custom_call.1} parent=1 // pred_check_branch
      %85 = sbr.rel (0) target = $region33
    $region32: #{tpu_custom_call.1} parent=1 // pred_region
      _
    $region33: #{tpu_custom_call.1} parent=1 // pred_fallthru
      _
    // Predicated region
    $region34: #{tpu_custom_call.1} parent=1 // pred_check
      _
    $region35: #{tpu_custom_call.1} parent=1 // pred_check_branch
      %87 = sbr.rel (0) target = $region37
    $region36: #{tpu_custom_call.1} parent=1 // pred_region
      _
    $region37: #{tpu_custom_call.1} parent=1 // pred_fallthru
      _
    // Predicated region
    $region38: #{tpu_custom_call.1} parent=1 // pred_check
      _
    $region39: #{tpu_custom_call.1} parent=1 // pred_check_branch
      %89 = sbr.rel (0) target = $region41
    $region40: #{tpu_custom_call.1} parent=1 // pred_region
      %90 = dma.done [#allocation3], 128
    $region41: #{tpu_custom_call.1} parent=1 // pred_fallthru
      _
    // Predicated region
    $region42: #{tpu_custom_call.1} parent=1 // pred_check
      _
    $region43: #{tpu_custom_call.1} parent=1 // pred_check_branch
      %92 = sbr.rel (0) target = $region45
    $region44: #{tpu_custom_call.1} parent=1 // pred_region
      %93 = dma.done [#allocation6], 2048
    $region45: #{tpu_custom_call.1} parent=1 // pred_fallthru
      _
    // Predicated region
    $region46: #{tpu_custom_call.1} parent=1 // pred_check
      _
    $region47: #{tpu_custom_call.1} parent=1 // pred_check_branch
      %95 = sbr.rel (0) target = $region49
    $region48: #{tpu_custom_call.1} parent=1 // pred_region
      %96 = dma.done [#allocation6], 2048
    $region49: #{tpu_custom_call.1} parent=1 // pred_fallthru
      _
    // Predicated region
    $region50: #{tpu_custom_call.1} parent=1 // pred_check
      _
    $region51: #{tpu_custom_call.1} parent=1 // pred_check_branch
      %98 = sbr.rel (0) target = $region53
    $region52: #{tpu_custom_call.1} parent=1 // pred_region
      %99 = dma.done [#allocation9], 2048
    $region53: #{tpu_custom_call.1} parent=1 // pred_fallthru
      _
    // Predicated region
    $region54: #{tpu_custom_call.1} parent=1 // pred_check
      _
    $region55: #{tpu_custom_call.1} parent=1 // pred_check_branch
      %101 = sbr.rel (0) target = $region57
    $region56: #{tpu_custom_call.1} parent=1 // pred_region
      %102 = dma.done [#allocation9], 2048
    $region57: #{tpu_custom_call.1} parent=1 // pred_fallthru
      _
    %v103 = vld [vmem:[#allocation5] sm:$0xff]
    %v104 = vld [vmem:[#allocation5 + $0x8] sm:$0xff]
    %v105 = vld [vmem:[#allocation5 + $0x10] sm:$0xff]
    %v106 = vld [vmem:[#allocation5 + $0x18] sm:$0xff]
    %v107 = vld [vmem:[#allocation5 + $0x20] sm:$0xff]
    %v108 = vld [vmem:[#allocation5 + $0x28] sm:$0xff]
    %v109 = vld [vmem:[#allocation5 + $0x30] sm:$0xff]
    %v110 = vld [vmem:[#allocation5 + $0x38] sm:$0xff]
    %v111 = vld [vmem:[#allocation5 + $0x40] sm:$0xff]
    %v112 = vld [vmem:[#allocation5 + $0x48] sm:$0xff]
    %v113 = vld [vmem:[#allocation5 + $0x50] sm:$0xff]
    %v114 = vld [vmem:[#allocation5 + $0x58] sm:$0xff]
    %v115 = vld [vmem:[#allocation5 + $0x60] sm:$0xff]
    %v116 = vld [vmem:[#allocation5 + $0x68] sm:$0xff]
    %v117 = vld [vmem:[#allocation5 + $0x70] sm:$0xff]
    %v118 = vld [vmem:[#allocation5 + $0x78] sm:$0xff]
    %v119 = vld [vmem:[#allocation7] sm:$0xff]
    %v120 = vld [vmem:[#allocation7 + $0x8] sm:$0xff]
    %v121 = vld [vmem:[#allocation7 + $0x10] sm:$0xff]
    %v122 = vld [vmem:[#allocation7 + $0x18] sm:$0xff]
    %v123 = vld [vmem:[#allocation7 + $0x20] sm:$0xff]
    %v124 = vld [vmem:[#allocation7 + $0x28] sm:$0xff]
    %v125 = vld [vmem:[#allocation7 + $0x30] sm:$0xff]
    %v126 = vld [vmem:[#allocation7 + $0x38] sm:$0xff]
    %v127 = vld [vmem:[#allocation7 + $0x40] sm:$0xff]
    %v128 = vld [vmem:[#allocation7 + $0x48] sm:$0xff]
    %v129 = vld [vmem:[#allocation7 + $0x50] sm:$0xff]
    %v130 = vld [vmem:[#allocation7 + $0x58] sm:$0xff]
    %v131 = vld [vmem:[#allocation7 + $0x60] sm:$0xff]
    %v132 = vld [vmem:[#allocation7 + $0x68] sm:$0xff]
    %v133 = vld [vmem:[#allocation7 + $0x70] sm:$0xff]
    %v134 = vld [vmem:[#allocation7 + $0x78] sm:$0xff]
    %v135 = vld [vmem:[#allocation8] sm:$0xff]
    %v136 = vld [vmem:[#allocation8 + $0x8] sm:$0xff]
    %v137 = vld [vmem:[#allocation8 + $0x10] sm:$0xff]
    %v138 = vld [vmem:[#allocation8 + $0x18] sm:$0xff]
    %v139 = vld [vmem:[#allocation8 + $0x20] sm:$0xff]
    %v140 = vld [vmem:[#allocation8 + $0x28] sm:$0xff]
    %v141 = vld [vmem:[#allocation8 + $0x30] sm:$0xff]
    %v142 = vld [vmem:[#allocation8 + $0x38] sm:$0xff]
    %v143 = vld [vmem:[#allocation8 + $0x40] sm:$0xff]
    %v144 = vld [vmem:[#allocation8 + $0x48] sm:$0xff]
    %v145 = vld [vmem:[#allocation8 + $0x50] sm:$0xff]
    %v146 = vld [vmem:[#allocation8 + $0x58] sm:$0xff]
    %v147 = vld [vmem:[#allocation8 + $0x60] sm:$0xff]
    %v148 = vld [vmem:[#allocation8 + $0x68] sm:$0xff]
    %v149 = vld [vmem:[#allocation8 + $0x70] sm:$0xff]
    %v150 = vld [vmem:[#allocation8 + $0x78] sm:$0xff]
    %v151 = vld [vmem:[#allocation10] sm:$0xff]
    %v152 = vld [vmem:[#allocation10 + $0x8] sm:$0xff]
    %v153 = vld [vmem:[#allocation10 + $0x10] sm:$0xff]
    %v154 = vld [vmem:[#allocation10 + $0x18] sm:$0xff]
    %v155 = vld [vmem:[#allocation10 + $0x20] sm:$0xff]
    %v156 = vld [vmem:[#allocation10 + $0x28] sm:$0xff]
    %v157 = vld [vmem:[#allocation10 + $0x30] sm:$0xff]
    %v158 = vld [vmem:[#allocation10 + $0x38] sm:$0xff]
    %v159 = vld [vmem:[#allocation10 + $0x40] sm:$0xff]
    %v160 = vld [vmem:[#allocation10 + $0x48] sm:$0xff]
    %v161 = vld [vmem:[#allocation10 + $0x50] sm:$0xff]
    %v162 = vld [vmem:[#allocation10 + $0x58] sm:$0xff]
    %v163 = vld [vmem:[#allocation10 + $0x60] sm:$0xff]
    %v164 = vld [vmem:[#allocation10 + $0x68] sm:$0xff]
    %v165 = vld [vmem:[#allocation10 + $0x70] sm:$0xff]
    %v166 = vld [vmem:[#allocation10 + $0x78] sm:$0xff]
    %vm167 = vcmp.gt.f32.partialorder %v151, 0.5
    %vm168 = vcmp.gt.f32.partialorder %v152, 0.5
    %vm169 = vcmp.gt.f32.partialorder %v153, 0.5
    %vm170 = vcmp.gt.f32.partialorder %v154, 0.5
    %vm171 = vcmp.gt.f32.partialorder %v155, 0.5
    %vm172 = vcmp.gt.f32.partialorder %v156, 0.5
    %vm173 = vcmp.gt.f32.partialorder %v157, 0.5
    %vm174 = vcmp.gt.f32.partialorder %v158, 0.5
    %vm175 = vcmp.gt.f32.partialorder %v159, 0.5
    %vm176 = vcmp.gt.f32.partialorder %v160, 0.5
    %vm177 = vcmp.gt.f32.partialorder %v161, 0.5
    %vm178 = vcmp.gt.f32.partialorder %v162, 0.5
    %vm179 = vcmp.gt.f32.partialorder %v163, 0.5
    %vm180 = vcmp.gt.f32.partialorder %v164, 0.5
    %vm181 = vcmp.gt.f32.partialorder %v165, 0.5
    %vm182 = vcmp.gt.f32.partialorder %v166, 0.5
    %v183 = vsel %vm167, %v103, 0.0
    %v184 = vsel %vm168, %v104, 0.0
    %v185 = vsel %vm169, %v105, 0.0
    %v186 = vsel %vm170, %v106, 0.0
    %v187 = vsel %vm171, %v107, 0.0
    %v188 = vsel %vm172, %v108, 0.0
    %v189 = vsel %vm173, %v109, 0.0
    %v190 = vsel %vm174, %v110, 0.0
    %v191 = vsel %vm175, %v111, 0.0
    %v192 = vsel %vm176, %v112, 0.0
    %v193 = vsel %vm177, %v113, 0.0
    %v194 = vsel %vm178, %v114, 0.0
    %v195 = vsel %vm179, %v115, 0.0
    %v196 = vsel %vm180, %v116, 0.0
    %v197 = vsel %vm181, %v117, 0.0
    %v198 = vsel %vm182, %v118, 0.0
    %v199 = vmax.f32 %v119, 0.0
    %v200 = vmax.f32 %v120, 0.0
    %v201 = vmax.f32 %v121, 0.0
    %v202 = vmax.f32 %v122, 0.0
    %v203 = vmax.f32 %v123, 0.0
    %v204 = vmax.f32 %v124, 0.0
    %v205 = vmax.f32 %v125, 0.0
    %v206 = vmax.f32 %v126, 0.0
    %v207 = vmax.f32 %v127, 0.0
    %v208 = vmax.f32 %v128, 0.0
    %v209 = vmax.f32 %v129, 0.0
    %v210 = vmax.f32 %v130, 0.0
    %v211 = vmax.f32 %v131, 0.0
    %v212 = vmax.f32 %v132, 0.0
    %v213 = vmax.f32 %v133, 0.0
    %v214 = vmax.f32 %v134, 0.0
    %v215 = vand.u32 2147483647, %v119
    %v216 = vand.u32 2147483647, %v120
    %v217 = vand.u32 2147483647, %v121
    %v218 = vand.u32 2147483647, %v122
    %v219 = vand.u32 2147483647, %v123
    %v220 = vand.u32 2147483647, %v124
    %v221 = vand.u32 2147483647, %v125
    %v222 = vand.u32 2147483647, %v126
    %v223 = vand.u32 2147483647, %v127
    %v224 = vand.u32 2147483647, %v128
    %v225 = vand.u32 2147483647, %v129
    %v226 = vand.u32 2147483647, %v130
    %v227 = vand.u32 2147483647, %v131
    %v228 = vand.u32 2147483647, %v132
    %v229 = vand.u32 2147483647, %v133
    %v230 = vand.u32 2147483647, %v134
    %v231 = vsub.f32 0.0, %v215
    %v232 = vsub.f32 0.0, %v216
    %v233 = vsub.f32 0.0, %v217
    %v234 = vsub.f32 0.0, %v218
    %v235 = vsub.f32 0.0, %v219
    %v236 = vsub.f32 0.0, %v220
    %v237 = vsub.f32 0.0, %v221
    %v238 = vsub.f32 0.0, %v222
    %v239 = vsub.f32 0.0, %v223
    %v240 = vsub.f32 0.0, %v224
    %v241 = vsub.f32 0.0, %v225
    %v242 = vsub.f32 0.0, %v226
    %v243 = vsub.f32 0.0, %v227
    %v244 = vsub.f32 0.0, %v228
    %v245 = vsub.f32 0.0, %v229
    %v246 = vsub.f32 0.0, %v230
    %v247 = vmul.f32 %v231, 1.442695
    %v248 = vpow.pop %v247
    %v249 = vmul.f32 %v232, 1.442695
    %v250 = vpow.pop %v249
    %v251 = vmul.f32 %v233, 1.442695
    %v252 = vpow.pop %v251
    %v253 = vmul.f32 %v234, 1.442695
    %v254 = vpow.pop %v253
    %v255 = vmul.f32 %v235, 1.442695
    %v256 = vpow.pop %v255
    %v257 = vmul.f32 %v236, 1.442695
    %v258 = vpow.pop %v257
    %v259 = vmul.f32 %v237, 1.442695
    %v260 = vpow.pop %v259
    %v261 = vmul.f32 %v238, 1.442695
    %v262 = vpow.pop %v261
    %v263 = vmul.f32 %v239, 1.442695
    %v264 = vpow.pop %v263
    %v265 = vmul.f32 %v240, 1.442695
    %v266 = vpow.pop %v265
    %v267 = vmul.f32 %v241, 1.442695
    %v268 = vpow.pop %v267
    %v269 = vmul.f32 %v242, 1.442695
    %v270 = vpow.pop %v269
    %v271 = vmul.f32 %v243, 1.442695
    %v272 = vpow.pop %v271
    %v273 = vmul.f32 %v244, 1.442695
    %v274 = vpow.pop %v273
    %v275 = vmul.f32 %v245, 1.442695
    %v276 = vpow.pop %v275
    %v277 = vmul.f32 %v246, 1.442695
    %v278 = vpow.pop %v277
    %v279 = vadd.f32 %v248, 1.0
    %v280 = vlog2.pop %v279
    %v281 = vmul.f32 %v280, 0.6931472
    %v282 = vmul.f32 -0.5, %v248
    %v283 = vadd.f32 %v282, 1.0
    %v284 = vmul.f32 %v283, %v248
    %v285 = vand.u32 2147483647, %v248
    %vm286 = vcmp.lt.f32.partialorder %v285, 0.0004427343
    %v287 = vsel %vm286, %v284, %v281
    %v288 = vadd.f32 %v250, 1.0
    %v289 = vlog2.pop %v288
    %v290 = vmul.f32 %v289, 0.6931472
    %v291 = vmul.f32 -0.5, %v250
    %v292 = vadd.f32 %v291, 1.0
    %v293 = vmul.f32 %v292, %v250
    %v294 = vand.u32 2147483647, %v250
    %vm295 = vcmp.lt.f32.partialorder %v294, 0.0004427343
    %v296 = vsel %vm295, %v293, %v290
    %v297 = vadd.f32 %v252, 1.0
    %v298 = vlog2.pop %v297
    %v299 = vmul.f32 %v298, 0.6931472
    %v300 = vmul.f32 -0.5, %v252
    %v301 = vadd.f32 %v300, 1.0
    %v302 = vmul.f32 %v301, %v252
    %v303 = vand.u32 2147483647, %v252
    %vm304 = vcmp.lt.f32.partialorder %v303, 0.0004427343
    %v305 = vsel %vm304, %v302, %v299
    %v306 = vadd.f32 %v254, 1.0
    %v307 = vlog2.pop %v306
    %v308 = vmul.f32 %v307, 0.6931472
    %v309 = vmul.f32 -0.5, %v254
    %v310 = vadd.f32 %v309, 1.0
    %v311 = vmul.f32 %v310, %v254
    %v312 = vand.u32 2147483647, %v254
    %vm313 = vcmp.lt.f32.partialorder %v312, 0.0004427343
    %v314 = vsel %vm313, %v311, %v308
    %v315 = vadd.f32 %v256, 1.0
    %v316 = vlog2.pop %v315
    %v317 = vmul.f32 %v316, 0.6931472
    %v318 = vmul.f32 -0.5, %v256
    %v319 = vadd.f32 %v318, 1.0
    %v320 = vmul.f32 %v319, %v256
    %v321 = vand.u32 2147483647, %v256
    %vm322 = vcmp.lt.f32.partialorder %v321, 0.0004427343
    %v323 = vsel %vm322, %v320, %v317
    %v324 = vadd.f32 %v258, 1.0
    %v325 = vlog2.pop %v324
    %v326 = vmul.f32 %v325, 0.6931472
    %v327 = vmul.f32 -0.5, %v258
    %v328 = vadd.f32 %v327, 1.0
    %v329 = vmul.f32 %v328, %v258
    %v330 = vand.u32 2147483647, %v258
    %vm331 = vcmp.lt.f32.partialorder %v330, 0.0004427343
    %v332 = vsel %vm331, %v329, %v326
    %v333 = vadd.f32 %v260, 1.0
    %v334 = vlog2.pop %v333
    %v335 = vmul.f32 %v334, 0.6931472
    %v336 = vmul.f32 -0.5, %v260
    %v337 = vadd.f32 %v336, 1.0
    %v338 = vmul.f32 %v337, %v260
    %v339 = vand.u32 2147483647, %v260
    %vm340 = vcmp.lt.f32.partialorder %v339, 0.0004427343
    %v341 = vsel %vm340, %v338, %v335
    %v342 = vadd.f32 %v262, 1.0
    %v343 = vlog2.pop %v342
    %v344 = vmul.f32 %v343, 0.6931472
    %v345 = vmul.f32 -0.5, %v262
    %v346 = vadd.f32 %v345, 1.0
    %v347 = vmul.f32 %v346, %v262
    %v348 = vand.u32 2147483647, %v262
    %vm349 = vcmp.lt.f32.partialorder %v348, 0.0004427343
    %v350 = vsel %vm349, %v347, %v344
    %v351 = vadd.f32 %v264, 1.0
    %v352 = vlog2.pop %v351
    %v353 = vmul.f32 %v352, 0.6931472
    %v354 = vmul.f32 -0.5, %v264
    %v355 = vadd.f32 %v354, 1.0
    %v356 = vmul.f32 %v355, %v264
    %v357 = vand.u32 2147483647, %v264
    %vm358 = vcmp.lt.f32.partialorder %v357, 0.0004427343
    %v359 = vsel %vm358, %v356, %v353
    %v360 = vadd.f32 %v266, 1.0
    %v361 = vlog2.pop %v360
    %v362 = vmul.f32 %v361, 0.6931472
    %v363 = vmul.f32 -0.5, %v266
    %v364 = vadd.f32 %v363, 1.0
    %v365 = vmul.f32 %v364, %v266
    %v366 = vand.u32 2147483647, %v266
    %vm367 = vcmp.lt.f32.partialorder %v366, 0.0004427343
    %v368 = vsel %vm367, %v365, %v362
    %v369 = vadd.f32 %v268, 1.0
    %v370 = vlog2.pop %v369
    %v371 = vmul.f32 %v370, 0.6931472
    %v372 = vmul.f32 -0.5, %v268
    %v373 = vadd.f32 %v372, 1.0
    %v374 = vmul.f32 %v373, %v268
    %v375 = vand.u32 2147483647, %v268
    %vm376 = vcmp.lt.f32.partialorder %v375, 0.0004427343
    %v377 = vsel %vm376, %v374, %v371
    %v378 = vadd.f32 %v270, 1.0
    %v379 = vlog2.pop %v378
    %v380 = vmul.f32 %v379, 0.6931472
    %v381 = vmul.f32 -0.5, %v270
    %v382 = vadd.f32 %v381, 1.0
    %v383 = vmul.f32 %v382, %v270
    %v384 = vand.u32 2147483647, %v270
    %vm385 = vcmp.lt.f32.partialorder %v384, 0.0004427343
    %v386 = vsel %vm385, %v383, %v380
    %v387 = vadd.f32 %v272, 1.0
    %v388 = vlog2.pop %v387
    %v389 = vmul.f32 %v388, 0.6931472
    %v390 = vmul.f32 -0.5, %v272
    %v391 = vadd.f32 %v390, 1.0
    %v392 = vmul.f32 %v391, %v272
    %v393 = vand.u32 2147483647, %v272
    %vm394 = vcmp.lt.f32.partialorder %v393, 0.0004427343
    %v395 = vsel %vm394, %v392, %v389
    %v396 = vadd.f32 %v274, 1.0
    %v397 = vlog2.pop %v396
    %v398 = vmul.f32 %v397, 0.6931472
    %v399 = vmul.f32 -0.5, %v274
    %v400 = vadd.f32 %v399, 1.0
    %v401 = vmul.f32 %v400, %v274
    %v402 = vand.u32 2147483647, %v274
    %vm403 = vcmp.lt.f32.partialorder %v402, 0.0004427343
    %v404 = vsel %vm403, %v401, %v398
    %v405 = vadd.f32 %v276, 1.0
    %v406 = vlog2.pop %v405
    %v407 = vmul.f32 %v406, 0.6931472
    %v408 = vmul.f32 -0.5, %v276
    %v409 = vadd.f32 %v408, 1.0
    %v410 = vmul.f32 %v409, %v276
    %v411 = vand.u32 2147483647, %v276
    %vm412 = vcmp.lt.f32.partialorder %v411, 0.0004427343
    %v413 = vsel %vm412, %v410, %v407
    %v414 = vadd.f32 %v278, 1.0
    %v415 = vlog2.pop %v414
    %v416 = vmul.f32 %v415, 0.6931472
    %v417 = vmul.f32 -0.5, %v278
    %v418 = vadd.f32 %v417, 1.0
    %v419 = vmul.f32 %v418, %v278
    %v420 = vand.u32 2147483647, %v278
    %vm421 = vcmp.lt.f32.partialorder %v420, 0.0004427343
    %v422 = vsel %vm421, %v419, %v416
    %v423 = vadd.f32 %v199, %v287
    %v424 = vadd.f32 %v200, %v296
    %v425 = vadd.f32 %v201, %v305
    %v426 = vadd.f32 %v202, %v314
    %v427 = vadd.f32 %v203, %v323
    %v428 = vadd.f32 %v204, %v332
    %v429 = vadd.f32 %v205, %v341
    %v430 = vadd.f32 %v206, %v350
    %v431 = vadd.f32 %v207, %v359
    %v432 = vadd.f32 %v208, %v368
    %v433 = vadd.f32 %v209, %v377
    %v434 = vadd.f32 %v210, %v386
    %v435 = vadd.f32 %v211, %v395
    %v436 = vadd.f32 %v212, %v404
    %v437 = vadd.f32 %v213, %v413
    %v438 = vadd.f32 %v214, %v422
    %v439 = vmul.f32 %v423, %v135
    %v440 = vmul.f32 %v424, %v136
    %v441 = vmul.f32 %v425, %v137
    %v442 = vmul.f32 %v426, %v138
    %v443 = vmul.f32 %v427, %v139
    %v444 = vmul.f32 %v428, %v140
    %v445 = vmul.f32 %v429, %v141
    %v446 = vmul.f32 %v430, %v142
    %v447 = vmul.f32 %v431, %v143
    %v448 = vmul.f32 %v432, %v144
    %v449 = vmul.f32 %v433, %v145
    %v450 = vmul.f32 %v434, %v146
    %v451 = vmul.f32 %v435, %v147
    %v452 = vmul.f32 %v436, %v148
    %v453 = vmul.f32 %v437, %v149
    %v454 = vmul.f32 %v438, %v150
    %v455 = vadd.f32 %v183, %v439
    %v456 = vadd.f32 %v184, %v440
    %v457 = vadd.f32 %v185, %v441
    %v458 = vadd.f32 %v186, %v442
    %v459 = vadd.f32 %v187, %v443
    %v460 = vadd.f32 %v188, %v444
    %v461 = vadd.f32 %v189, %v445
    %v462 = vadd.f32 %v190, %v446
    %v463 = vadd.f32 %v191, %v447
    %v464 = vadd.f32 %v192, %v448
    %v465 = vadd.f32 %v193, %v449
    %v466 = vadd.f32 %v194, %v450
    %v467 = vadd.f32 %v195, %v451
    %v468 = vadd.f32 %v196, %v452
    %v469 = vadd.f32 %v197, %v453
    %v470 = vadd.f32 %v198, %v454
    %471 = vst [vmem:[#allocation12] sm:$0xff] %v455
    %472 = vst [vmem:[#allocation12 + $0x8] sm:$0xff] %v456
    %473 = vst [vmem:[#allocation12 + $0x10] sm:$0xff] %v457
    %474 = vst [vmem:[#allocation12 + $0x18] sm:$0xff] %v458
    %475 = vst [vmem:[#allocation12 + $0x20] sm:$0xff] %v459
    %476 = vst [vmem:[#allocation12 + $0x28] sm:$0xff] %v460
    %477 = vst [vmem:[#allocation12 + $0x30] sm:$0xff] %v461
    %478 = vst [vmem:[#allocation12 + $0x38] sm:$0xff] %v462
    %479 = vst [vmem:[#allocation12 + $0x40] sm:$0xff] %v463
    %480 = vst [vmem:[#allocation12 + $0x48] sm:$0xff] %v464
    %481 = vst [vmem:[#allocation12 + $0x50] sm:$0xff] %v465
    %482 = vst [vmem:[#allocation12 + $0x58] sm:$0xff] %v466
    %483 = vst [vmem:[#allocation12 + $0x60] sm:$0xff] %v467
    %484 = vst [vmem:[#allocation12 + $0x68] sm:$0xff] %v468
    %485 = vst [vmem:[#allocation12 + $0x70] sm:$0xff] %v469
    %486 = vst [vmem:[#allocation12 + $0x78] sm:$0xff] %v470
    %p487 = scmp.eq.s32.totalorder 0, 0
    // Predicated region
    $region58: #{tpu_custom_call.1} parent=1 // pred_check
      %p488 = pneg %p487
    $region59: #{tpu_custom_call.1} parent=1 // pred_check_branch
      %490 = sbr.rel (%p488) target = $region61
    $region60: #{tpu_custom_call.1} parent=1 // pred_region
      %491 = vst [vmem:[#allocation11] sm:$0xff] 0.0
    $region61: #{tpu_custom_call.1} parent=1 // pred_fallthru
      _
    %v492 = vld [vmem:[#allocation11] sm:$0xff]
    %v493 = vld [vmem:[#allocation2] sm:$0xff]
    %v494 = vld [vmem:[#allocation12] sm:$0xff]
    %v495 = vld [vmem:[#allocation12 + $0x8] sm:$0xff]
    %v496 = vld [vmem:[#allocation12 + $0x10] sm:$0xff]
    %v497 = vld [vmem:[#allocation12 + $0x18] sm:$0xff]
    %v498 = vld [vmem:[#allocation12 + $0x20] sm:$0xff]
    %v499 = vld [vmem:[#allocation12 + $0x28] sm:$0xff]
    %v500 = vld [vmem:[#allocation12 + $0x30] sm:$0xff]
    %v501 = vld [vmem:[#allocation12 + $0x38] sm:$0xff]
    %v502 = vld [vmem:[#allocation12 + $0x40] sm:$0xff]
    %v503 = vld [vmem:[#allocation12 + $0x48] sm:$0xff]
    %v504 = vld [vmem:[#allocation12 + $0x50] sm:$0xff]
    %v505 = vld [vmem:[#allocation12 + $0x58] sm:$0xff]
    %v506 = vld [vmem:[#allocation12 + $0x60] sm:$0xff]
    %v507 = vld [vmem:[#allocation12 + $0x68] sm:$0xff]
    %v508 = vld [vmem:[#allocation12 + $0x70] sm:$0xff]
    %v509 = vld [vmem:[#allocation12 + $0x78] sm:$0xff]
    %510 = vmatprep.subr.mxu0 0.0
    %511 = vmatpush1.xpose.msra.mxu0 %v494
    %512 = vmatprep.subr.mxu0 0.0
    %513 = vmatpush1.xpose.msra.mxu0 %v495
    %514 = vmatprep.subr.mxu0 0.0
    %515 = vmatpush1.xpose.msra.mxu0 %v496
    %516 = vmatprep.subr.mxu0 0.0
    %517 = vmatpush1.xpose.msra.mxu0 %v497
    %518 = vmatprep.subr.mxu0 0.0
    %519 = vmatpush1.xpose.msra.mxu0 %v498
    %520 = vmatprep.subr.mxu0 0.0
    %521 = vmatpush1.xpose.msra.mxu0 %v499
    %522 = vmatprep.subr.mxu0 0.0
    %523 = vmatpush1.xpose.msra.mxu0 %v500
    %524 = vmatprep.subr.mxu0 0.0
    %525 = vmatpush1.xpose.msra.mxu0 %v501
    %526 = vmatprep.subr.mxu0 0.0
    %527 = vmatpush1.xpose.msra.mxu0 %v502
    %528 = vmatprep.subr.mxu0 0.0
    %529 = vmatpush1.xpose.msra.mxu0 %v503
    %530 = vmatprep.subr.mxu0 0.0
    %531 = vmatpush1.xpose.msra.mxu0 %v504
    %532 = vmatprep.subr.mxu0 0.0
    %533 = vmatpush1.xpose.msra.mxu0 %v505
    %534 = vmatprep.subr.mxu0 0.0
    %535 = vmatpush1.xpose.msra.mxu0 %v506
    %536 = vmatprep.subr.mxu0 0.0
    %537 = vmatpush1.xpose.msra.mxu0 %v507
    %538 = vmatprep.subr.mxu0 0.0
    %539 = vmatpush1.xpose.msra.mxu0 %v508
    %540 = vmatprep.subr.mxu0 0.0
    %541 = vmatpush1.xpose.msra.mxu0 %v509
    %542 = vmatprep.subr.mxu0 0.0
    %543 = vmatpush1.xpose.msra.mxu0 0.0
    %544 = vmatprep.subr.mxu0 0.0
    %545 = vmatpush1.xpose.msra.mxu0 0.0
    %546 = vmatprep.subr.mxu0 0.0
    %547 = vmatpush1.xpose.msra.mxu0 0.0
    %548 = vmatprep.subr.mxu0 0.0
    %549 = vmatpush1.xpose.msra.mxu0 0.0
    %550 = vmatprep.subr.mxu0 0.0
    %551 = vmatpush1.xpose.msra.mxu0 0.0
    %552 = vmatprep.subr.mxu0 0.0
    %553 = vmatpush1.xpose.msra.mxu0 0.0
    %554 = vmatprep.subr.mxu0 0.0
    %555 = vmatpush1.xpose.msra.mxu0 0.0
    %556 = vmatprep.subr.mxu0 0.0
    %557 = vmatpush1.xpose.msra.mxu0 0.0
    %558 = vmatprep.subr.mxu0 0.0
    %559 = vmatpush1.xpose.msra.mxu0 0.0
    %560 = vmatprep.subr.mxu0 0.0
    %561 = vmatpush1.xpose.msra.mxu0 0.0
    %562 = vmatprep.subr.mxu0 0.0
    %563 = vmatpush1.xpose.msra.mxu0 0.0
    %564 = vmatprep.subr.mxu0 0.0
    %565 = vmatpush1.xpose.msra.mxu0 0.0
    %566 = vmatprep.subr.mxu0 0.0
    %567 = vmatpush1.xpose.msra.mxu0 0.0
    %568 = vmatprep.subr.mxu0 0.0
    %569 = vmatpush1.xpose.msra.mxu0 0.0
    %570 = vmatprep.subr.mxu0 0.0
    %571 = vmatpush1.xpose.msra.mxu0 0.0
    %572 = vmatprep.subr.mxu0 0.0
    %573 = vmatpush1.xpose.msra.mxu0 0.0
    %574 = vmatprep.mubr.f32.mxu0 0.0
    %575 = vmatmul.mubr.f32.gmra.mrb[0].mxu0 %v493
    %v576 = vpop.f32.mrb[0].mxu0
    %v577 = vadd.f32 0.0, %v576
    %v578 = vpop.f32.mrb[0].mxu0
    %579 = vdwg.mxu0
    %v580 = vadd.f32 %v492, %v577
    %581 = vst [vmem:[#allocation11] sm:$0xff] %v580
    // Predicated region
    $region62: #{tpu_custom_call.1} parent=1 // pred_check
      %p582 = pneg %p487
    $region63: #{tpu_custom_call.1} parent=1 // pred_check_branch
      %584 = sbr.rel (%p582) target = $region65
    $region64: #{tpu_custom_call.1} parent=1 // pred_region
      %v585 = vld [vmem:[%s5] sm:$0x1]
      %v586 = vld [vmem:[%s6] sm:$0x1]
      %v587 = vld [vmem:[%s7] sm:$0x1]
      %v588 = vld [vmem:[%s8] sm:$0x1]
      %vm589 = vcmp.gt.f32.partialorder %v588, 0.5
      %v590 = vsel %vm589, %v585, 0.0
      %v591 = vmax.f32 %v586, 0.0
      %v592 = vand.u32 2147483647, %v586
      %v593 = vsub.f32 0.0, %v592
      %v594 = vmul.f32 %v593, 1.442695
      %v595 = vpow.pop %v594
      %v596 = vadd.f32 %v595, 1.0
      %v597 = vlog2.pop %v596
      %v598 = vmul.f32 %v597, 0.6931472
      %v599 = vmul.f32 -0.5, %v595
      %v600 = vadd.f32 %v599, 1.0
      %v601 = vmul.f32 %v600, %v595
      %v602 = vand.u32 2147483647, %v595
      %vm603 = vcmp.lt.f32.partialorder %v602, 0.0004427343
      %v604 = vsel %vm603, %v601, %v598
      %v605 = vadd.f32 %v591, %v604
      %v606 = vmul.f32 %v605, %v587
      %v607 = vadd.f32 %v590, %v606
      %608 = vst [vmem:[#allocation14] sm:$0x1] %v607
      %v609 = vld [vmem:[#allocation11] sm:$0xff]
      %v611 = vlaneseq
      %v612 = vshrl.u32 %v611, 7
      %v613 = vsub.s32 0, %v612
      %v614 = vrot.slane %v607, %v613
      %v616 = vadd.f32 %v609, %v614
      %617 = vst [vmem:[#allocation11] sm:$0xff] %v616
    $region65: #{tpu_custom_call.1} parent=1 // pred_fallthru
      _
    // Predicated region
    $region66: #{tpu_custom_call.1} parent=1 // pred_check
      _
    $region67: #{tpu_custom_call.1} parent=1 // pred_check_branch
      %619 = sbr.rel (0) target = $region69
    $region68: #{tpu_custom_call.1} parent=1 // pred_region
      %s621 = ssub.s32 128, 128
      %622 = vsyncadd [#allocation4], %s621
      %s624 = sshll.u32 [#allocation11], 4
      %s625 = int_to_ptr.vmem [resolvable:$true] %s624
      %627 = dma.vmem_to_hbm [thread:$0]  %s625, 128, %s9, [#allocation4]
    $region69: #{tpu_custom_call.1} parent=1 // pred_fallthru
      _
    // Predicated region
    $region70: #{tpu_custom_call.1} parent=1 // pred_check
      _
    $region71: #{tpu_custom_call.1} parent=1 // pred_check_branch
      %629 = sbr.rel (0) target = $region73
    $region72: #{tpu_custom_call.1} parent=1 // pred_region
      %s631 = ssub.s32 2048, 2048
      %632 = vsyncadd [#allocation13], %s631
      %s633 = sshll.u32 [#allocation12], 4
      %s634 = int_to_ptr.vmem [resolvable:$true] %s633
      %639 = dma.vmem_to_hbm [thread:$0]  %s634, 2048, %s10, [#allocation13], 128, 128, 8
    $region73: #{tpu_custom_call.1} parent=1 // pred_fallthru
      _
    // Predicated region
    $region74: #{tpu_custom_call.1} parent=1 // pred_check
      _
    $region75: #{tpu_custom_call.1} parent=1 // pred_check_branch
      %641 = sbr.rel (0) target = $region77
    $region76: #{tpu_custom_call.1} parent=1 // pred_region
      %s643 = ssub.s32 16, 16
      %644 = vsyncadd [#allocation13], %s643
      %s646 = sshll.u32 [#allocation14], 4
      %s647 = int_to_ptr.vmem [resolvable:$true] %s646
      %649 = dma.vmem_to_hbm [thread:$0]  %s647, 16, %s11, [#allocation13]
    $region77: #{tpu_custom_call.1} parent=1 // pred_fallthru
      _
    // Predicated region
    $region78: #{tpu_custom_call.1} parent=1 // pred_check
      _
    $region79: #{tpu_custom_call.1} parent=1 // pred_check_branch
      %651 = sbr.rel (0) target = $region81
    $region80: #{tpu_custom_call.1} parent=1 // pred_region
      %652 = dma.done [#allocation4], 128
    $region81: #{tpu_custom_call.1} parent=1 // pred_fallthru
      _
    // Predicated region
    $region82: #{tpu_custom_call.1} parent=1 // pred_check
      _
    $region83: #{tpu_custom_call.1} parent=1 // pred_check_branch
      %654 = sbr.rel (0) target = $region85
    $region84: #{tpu_custom_call.1} parent=1 // pred_region
      %655 = dma.done [#allocation13], 2048
    $region85: #{tpu_custom_call.1} parent=1 // pred_fallthru
      _
    // Predicated region
    $region86: #{tpu_custom_call.1} parent=1 // pred_check
      _
    $region87: #{tpu_custom_call.1} parent=1 // pred_check_branch
      %657 = sbr.rel (0) target = $region89
    $region88: #{tpu_custom_call.1} parent=1 // pred_region
      %658 = dma.done [#allocation13], 16
    $region89: #{tpu_custom_call.1} parent=1 // pred_fallthru
      _
    %659 = vsyncpa [#allocation3], 1
    %660 = vsyncpa [#allocation6], 1
    %661 = vsyncpa [#allocation9], 1
    %662 = vsyncpa [#allocation4], 1
    %663 = vsyncpa [#allocation13], 1

</llo_original>
